<compile_context>
chip_gen: v7x
topology: tpu7x:2x2x1
jax: 0.10.0
libtpu: 0.0.40
codegen_flags: <defaults>
</compile_context>

<pallas_src>
import functools

import jax
import jax.numpy as jnp
from jax.experimental import pallas as pl
from jax.experimental.pallas import tpu as pltpu


def _round_up(x, m):
    return (x + m - 1) // m * m


def cnn_kernel(x_ref, w_ref, b_ref, o_ref, *, seq_len, filter_size, h_pad):
    """One batch tile per grid step.

    x_ref : (TB*S, Ep)  bf16 embedded tokens for this batch tile (flat 2-D slab)
    w_ref : (Ep, F*Hp)  bf16 conv weight, filter-major along the N (lane) dim
    b_ref : (1, Hp)     f32 conv bias (zero padded to Hp)
    o_ref : (TB, Hp)    f32 pooled output
    """
    M, _ = x_ref.shape
    S = seq_len
    F = filter_size
    Hp = h_pad
    TB = M // S
    L = S - F + 1                                    # valid conv output length

    # Single MXU matmul: per-token projections for all F filter rows at once.
    y = jnp.dot(x_ref[...], w_ref[...],
                preferred_element_type=jnp.float32)  # (TB*S, F*Hp) f32

    # Free split of the M dim back into (batch, seq) when S | 8 (f32 sublanes);
    # otherwise Mosaic inserts a relayout copy (acceptable, S is small).
    y = y.reshape(TB, S, F * Hp)

    # Conv2d with kernel (F, E) == sum over F shifted per-token projections.
    # Accumulator initialized from the f=0 slice (no zeros+add pass).
    acc = y[:, 0:L, 0:Hp]
    for f in range(1, F):                            # static unrolled, F small
        acc = acc + y[:, f:f + L, f * Hp:(f + 1) * Hp]

    # MaxPool1d over the full conv-output length, THEN bias + ReLU
    # (equivalent: bias constant over L, ReLU monotone) -> epilogue on (TB, Hp).
    pooled = jnp.max(acc, axis=1)                    # (TB, Hp)
    o_ref[...] = jnp.maximum(pooled + b_ref[...], 0.0)


def make_cnn_forward(emb_table, conv_w, conv_b, filter_size, *, batch_tile=128):
    """Precompute padded / bf16 parameters once, return a jitted forward(tokens).

    emb_table: (V, E) f32, conv_w: (H, 1, F, E) f32, conv_b: (H,) f32.
    """
    V, E = emb_table.shape
    H = conv_w.shape[0]
    F = filter_size

    Hp = _round_up(H, 128)          # lane-dense output / matmul N dim
    Ep = _round_up(E, 128)          # lane-dense contraction dim

    # --- one-time parameter preparation (hoisted out of the forward path) ---
    emb_bf16 = jnp.pad(emb_table.astype(jnp.bfloat16), ((0, 0), (0, Ep - E)))
    # Conv weight (H, 1, F, E) -> (F, E, H) -> zero-pad -> (Ep, F*Hp),
    # with columns [f*Hp:(f+1)*Hp] holding filter row f.
    w = conv_w.reshape(H, F, E).transpose(1, 2, 0)          # (F, E, H)
    w = jnp.pad(w, ((0, 0), (0, Ep - E), (0, Hp - H))).astype(jnp.bfloat16)
    w_cat = jnp.transpose(w, (1, 0, 2)).reshape(Ep, F * Hp)
    b2 = jnp.pad(conv_b.astype(jnp.float32), (0, Hp - H)).reshape(1, Hp)
    emb_bf16, w_cat, b2 = jax.block_until_ready(
        jax.device_put((emb_bf16, w_cat, b2)))

    @jax.jit
    def forward(tokens):
        B, S = tokens.shape
        if S < F:
            raise ValueError(f"sequence length {S} shorter than filter size {F}")

        # Large batch tile (sublane-aligned) to amortize per-step overhead and
        # fill the MXU M stream; clamped so tiny batches stay one small tile.
        TB = min(_round_up(batch_tile, 8), _round_up(B, 8))
        Bp = _round_up(B, TB)

        tok_p = tokens if Bp == B else jnp.pad(tokens, ((0, Bp - B), (0, 0)))
        # Embedding gather stays in XLA (bf16 halves the HBM traffic); flattened
        # to a 2-D slab so the kernel block loads packed with no relayout.
        x2d = emb_bf16[tok_p].reshape(Bp * S, Ep)           # (Bp*S, Ep) bf16

        kernel = functools.partial(
            cnn_kernel, seq_len=S, filter_size=F, h_pad=Hp)
        out = pl.pallas_call(
            kernel,
            out_shape=jax.ShapeDtypeStruct((Bp, Hp), jnp.float32),
            grid_spec=pltpu.PrefetchScalarGridSpec(
                num_scalar_prefetch=0,
                grid=(Bp // TB,),
                in_specs=[
                    pl.BlockSpec((TB * S, Ep), lambda b: (b, 0)),
                    pl.BlockSpec((Ep, F * Hp), lambda b: (0, 0)),
                    pl.BlockSpec((1, Hp), lambda b: (0, 0)),
                ],
                out_specs=pl.BlockSpec((TB, Hp), lambda b: (b, 0)),
            ),
            compiler_params=pltpu.CompilerParams(
                # Batch-tile axis is independent -> sharded across the 2 TCs on
                # v7x when the grid has >=2 steps.
                dimension_semantics=("parallel",),
                vmem_limit_bytes=32 * 1024 * 1024,
            ),
        )(x2d, w_cat, b2)
        return out[:B, :H]

    return forward


def reference_forward(tokens, emb_table, conv_w, conv_b, filter_size):
    """Pure-JAX f32 reference matching the PyTorch forward (eval mode)."""
    x = emb_table[tokens].astype(jnp.float32)               # (B, S, E)
    B, S, E = x.shape
    H = conv_w.shape[0]
    F = filter_size
    L = S - F + 1
    w = conv_w.reshape(H, F, E)
    windows = jnp.stack([x[:, f:f + L, :] for f in range(F)], axis=2)  # (B,L,F,E)
    c = jnp.einsum("blfe,ofe->bol", windows, w) + conv_b[None, :, None]
    h = jnp.maximum(c, 0.0)
    return jnp.max(h, axis=2)                               # (B, H)


if __name__ == "__main__":
    # Small shapes consistent with the module (hidden_size=100, embedding_dim=200,
    # Conv2d kernel (filter_size, embedding_dim) over the full embedding width).
    B, S = 2, 8          # batch, sequence length
    V = 20               # vocab size (len(words) + 2 analogue)
    E = 200              # embedding_dim
    H = 100              # hidden_size
    F = 3                # filter_size

    key = jax.random.PRNGKey(0)
    k_emb, k_w, k_b, k_tok = jax.random.split(key, 4)

    emb_table = jax.random.normal(k_emb, (V, E), dtype=jnp.float32) * 0.1
    conv_w = jax.random.normal(k_w, (H, 1, F, E), dtype=jnp.float32) * 0.05
    conv_b = jax.random.normal(k_b, (H,), dtype=jnp.float32) * 0.01
    tokens = jax.random.randint(k_tok, (B, S), 0, V, dtype=jnp.int32)

    forward = make_cnn_forward(emb_table, conv_w, conv_b, F)
    out = jax.block_until_ready(forward(tokens))
    ref = reference_forward(tokens, emb_table, conv_w, conv_b, F)
    assert out.shape == (B, H), out.shape
    # bf16 matmul inputs vs. f32 reference -> loose-but-meaningful tolerance.
    max_err = float(jnp.max(jnp.abs(out - ref)))
    assert jnp.allclose(out, ref, atol=2e-2, rtol=2e-2), f"max abs err {max_err}"

    # Larger batch: exercises batch padding, a multi-step grid, and the
    # ("parallel",) batch-tile axis.
    B2 = 37
    tokens2 = jax.random.randint(jax.random.PRNGKey(1), (B2, S), 0, V,
                                 dtype=jnp.int32)
    forward2 = make_cnn_forward(emb_table, conv_w, conv_b, F, batch_tile=16)
    out2 = jax.block_until_ready(forward2(tokens2))
    ref2 = reference_forward(tokens2, emb_table, conv_w, conv_b, F)
    assert out2.shape == (B2, H), out2.shape
    max_err2 = float(jnp.max(jnp.abs(out2 - ref2)))
    assert jnp.allclose(out2, ref2, atol=2e-2, rtol=2e-2), f"max abs err {max_err2}"

    print("KERNEL_OK")
</pallas_src>

<mosaic_0001>
module attributes {stable_mosaic.version = 11 : i64} {
  func.func @cnn_kernel(%arg0: i32, %arg1: memref<64x256xbf16, #tpu.memory_space<vmem>>, %arg2: memref<256x384xbf16, #tpu.memory_space<vmem>>, %arg3: memref<1x128xf32, #tpu.memory_space<vmem>>, %arg4: memref<8x128xf32, #tpu.memory_space<vmem>>) attributes {dimension_semantics = [#tpu.dimension_semantics<parallel>], iteration_bounds = array<i64: 1>, scalar_prefetch = 0 : i64, scratch_operands = 0 : i64, tpu.core_type = #tpu.core_type<tc>, window_params = [{transform_indices = @transform_0, window_bounds = array<i64: 64, 256>}, {pipeline_mode = #tpu.pipeline_mode<synchronous>, transform_indices = @transform_1, window_bounds = array<i64: 256, 384>}, {pipeline_mode = #tpu.pipeline_mode<synchronous>, transform_indices = @transform_2, window_bounds = array<i64: 1, 128>}, {transform_indices = @transform_3, window_bounds = array<i64: 8, 128>}]} {
    %c0 = arith.constant 0 : index
    %c0_0 = arith.constant 0 : index
    %0 = vector.load %arg1[%c0, %c0_0] : memref<64x256xbf16, #tpu.memory_space<vmem>>, vector<64x256xbf16>
    %c0_1 = arith.constant 0 : index
    %c0_2 = arith.constant 0 : index
    %1 = vector.load %arg2[%c0_1, %c0_2] : memref<256x384xbf16, #tpu.memory_space<vmem>>, vector<256x384xbf16>
    %cst = arith.constant dense<0.000000e+00> : vector<64x384xf32>
    %2 = tpu.matmul %0, %1, %cst {dimension_numbers = #tpu.dot_dimension_numbers<[1], [0], [0], [1], [0, 0, 1, 1], [], []>} : vector<64x256xbf16>, vector<256x384xbf16>, vector<64x384xf32> -> vector<64x384xf32>
    %3 = vector.shape_cast %2 : vector<64x384xf32> to vector<8x8x384xf32>
    %4 = vector.extract_strided_slice %3 {offsets = [0, 0, 0], sizes = [8, 6, 128], strides = [1, 1, 1]} : vector<8x8x384xf32> to vector<8x6x128xf32>
    %5 = vector.extract_strided_slice %3 {offsets = [0, 1, 128], sizes = [8, 6, 128], strides = [1, 1, 1]} : vector<8x8x384xf32> to vector<8x6x128xf32>
    %6 = arith.addf %4, %5 : vector<8x6x128xf32>
    %7 = vector.extract_strided_slice %3 {offsets = [0, 2, 256], sizes = [8, 6, 128], strides = [1, 1, 1]} : vector<8x8x384xf32> to vector<8x6x128xf32>
    %8 = arith.addf %6, %7 : vector<8x6x128xf32>
    %cst_3 = arith.constant dense<0xFF800000> : vector<8x128xf32>
    %9 = vector.multi_reduction <maximumf>, %8, %cst_3 [1] : vector<8x6x128xf32> to vector<8x128xf32>
    %c0_4 = arith.constant 0 : index
    %c0_5 = arith.constant 0 : index
    %10 = vector.load %arg3[%c0_4, %c0_5] : memref<1x128xf32, #tpu.memory_space<vmem>>, vector<1x128xf32>
    %11 = vector.broadcast %10 : vector<1x128xf32> to vector<8x128xf32>
    %12 = arith.addf %9, %11 : vector<8x128xf32>
    %cst_6 = arith.constant 0.000000e+00 : f32
    %13 = vector.broadcast %cst_6 : f32 to vector<8x128xf32>
    %14 = arith.maximumf %12, %13 : vector<8x128xf32>
    %c0_7 = arith.constant 0 : index
    %c0_8 = arith.constant 0 : index
    %15 = vector.load %arg4[%c0_7, %c0_8] : memref<8x128xf32, #tpu.memory_space<vmem>>, vector<8x128xf32>
    tpu.vector_store %arg4[%c0_7, %c0_8], %14 {strides = array<i32>} : memref<8x128xf32, #tpu.memory_space<vmem>>, vector<8x128xf32>,
    return
  }
  func.func @transform_0(%arg0: i32) -> (i32, i32) {
    %c0_i32 = arith.constant 0 : i32
    %c0_i32_0 = arith.constant 0 : i32
    return %arg0, %c0_i32 : i32, i32
  }
  func.func @transform_1(%arg0: i32) -> (i32, i32) {
    %c0_i32 = arith.constant 0 : i32
    %c0_i32_0 = arith.constant 0 : i32
    %c0_i32_1 = arith.constant 0 : i32
    return %c0_i32, %c0_i32_0 : i32, i32
  }
  func.func @transform_2(%arg0: i32) -> (i32, i32) {
    %c0_i32 = arith.constant 0 : i32
    %c0_i32_0 = arith.constant 0 : i32
    %c0_i32_1 = arith.constant 0 : i32
    return %c0_i32, %c0_i32_0 : i32, i32
  }
  func.func @transform_3(%arg0: i32) -> (i32, i32) {
    %c0_i32 = arith.constant 0 : i32
    %c0_i32_0 = arith.constant 0 : i32
    return %arg0, %c0_i32 : i32, i32
  }
}

</mosaic_0001>

<llo_original>
// kernel: forward.1
$region0: #{forward.1}
  #allocation0 [shape = 'u32[]', space=smem, size = 0x4, offset = 0x4, fixed_abs, tag = 'smem constant byte address 0x4 - core index']
  #allocation1 [shape = 'u32[144,128]{1,0:T(1,128)}', space=vmem, size = 0x12000, scoped, tag = 'internal scratch']
  %s0 = inlined_call_operand.vmem [shape: bf16[64,256], index: 0, kind: input, shape index: {}]
  %s1 = inlined_call_operand.vmem [shape: bf16[256,384], index: 1, kind: input, shape index: {}]
  %s2 = inlined_call_operand.vmem [shape: f32[1,128], index: 2, kind: input, shape index: {}]
  %s3 = inlined_call_operand.vmem [shape: f32[8,128], index: 3, kind: output, shape index: {}]
  %s4 = sld [smem:[#allocation0]]
  $region22: #{forward.1} parent=0
    _
  %s6 = ssub.s32 1, %s4
  %s7 = scalar_select 0, %s6, %s4
  // Predicated region
  $region2: #{forward.1} parent=0 // pred_check
    _
  $region3: #{forward.1} parent=0 // pred_check_branch
    %9 = sbr.rel (0) target = $region5
  $region4: #{forward.1} parent=0 // pred_region
    _
  $region5: #{forward.1} parent=0 // pred_fallthru
    _
  // Predicated region
  $region6: #{forward.1} parent=0 // pred_check
    _
  $region7: #{forward.1} parent=0 // pred_check_branch
    %11 = sbr.rel (0) target = $region9
  $region8: #{forward.1} parent=0 // pred_region
    _
  $region9: #{forward.1} parent=0 // pred_fallthru
    _
  // Predicated region
  $region10: #{forward.1} parent=0 // pred_check
    _
  $region11: #{forward.1} parent=0 // pred_check_branch
    %13 = sbr.rel (0) target = $region13
  $region12: #{forward.1} parent=0 // pred_region
    _
  $region13: #{forward.1} parent=0 // pred_fallthru
    _
  %v15 = vld [vmem:[%s0] sm:$0xff]
  %v16 = vld [vmem:[%s0 + $0x8] sm:$0xff]
  %v17 = vld [vmem:[%s0 + $0x10] sm:$0xff]
  %v18 = vld [vmem:[%s0 + $0x18] sm:$0xff]
  %v19 = vld [vmem:[%s0 + $0x20] sm:$0xff]
  %v20 = vld [vmem:[%s0 + $0x28] sm:$0xff]
  %v21 = vld [vmem:[%s0 + $0x30] sm:$0xff]
  %v22 = vld [vmem:[%s0 + $0x38] sm:$0xff]
  %v23 = vld [vmem:[%s1] sm:$0xff]
  %v24 = vld [vmem:[%s1 + $0x8] sm:$0xf]
  %v25 = vld [vmem:[%s1 + $0xc] sm:$0xff]
  %v26 = vld [vmem:[%s1 + $0x14] sm:$0xf]
  %v27 = vld [vmem:[%s1 + $0x18] sm:$0xff]
  %v28 = vld [vmem:[%s1 + $0x20] sm:$0xf]
  %v29 = vld [vmem:[%s1 + $0x24] sm:$0xff]
  %v30 = vld [vmem:[%s1 + $0x2c] sm:$0xf]
  %v31 = vld [vmem:[%s1 + $0x30] sm:$0xff]
  %v32 = vld [vmem:[%s1 + $0x38] sm:$0xf]
  %v33 = vld [vmem:[%s1 + $0x3c] sm:$0xff]
  %v34 = vld [vmem:[%s1 + $0x44] sm:$0xf]
  %v35 = vld [vmem:[%s1 + $0x48] sm:$0xff]
  %v36 = vld [vmem:[%s1 + $0x50] sm:$0xf]
  %v37 = vld [vmem:[%s1 + $0x54] sm:$0xff]
  %v38 = vld [vmem:[%s1 + $0x5c] sm:$0xf]
  %v39 = vld [vmem:[%s1 + $0x60] sm:$0xff]
  %v40 = vld [vmem:[%s1 + $0x68] sm:$0xf]
  %v41 = vld [vmem:[%s1 + $0x6c] sm:$0xff]
  %v42 = vld [vmem:[%s1 + $0x74] sm:$0xf]
  %v43 = vld [vmem:[%s1 + $0x78] sm:$0xff]
  %v44 = vld [vmem:[%s1 + $0x80] sm:$0xf]
  %v45 = vld [vmem:[%s1 + $0x84] sm:$0xff]
  %v46 = vld [vmem:[%s1 + $0x8c] sm:$0xf]
  %v47 = vld [vmem:[%s1 + $0x90] sm:$0xff]
  %v48 = vld [vmem:[%s1 + $0x98] sm:$0xf]
  %v49 = vld [vmem:[%s1 + $0x9c] sm:$0xff]
  %v50 = vld [vmem:[%s1 + $0xa4] sm:$0xf]
  %v51 = vld [vmem:[%s1 + $0xa8] sm:$0xff]
  %v52 = vld [vmem:[%s1 + $0xb0] sm:$0xf]
  %v53 = vld [vmem:[%s1 + $0xb4] sm:$0xff]
  %v54 = vld [vmem:[%s1 + $0xbc] sm:$0xf]
  %v55 = vld [vmem:[%s1 + $0xc0] sm:$0xff]
  %v56 = vld [vmem:[%s1 + $0xc8] sm:$0xf]
  %v57 = vld [vmem:[%s1 + $0xcc] sm:$0xff]
  %v58 = vld [vmem:[%s1 + $0xd4] sm:$0xf]
  %v59 = vld [vmem:[%s1 + $0xd8] sm:$0xff]
  %v60 = vld [vmem:[%s1 + $0xe0] sm:$0xf]
  %v61 = vld [vmem:[%s1 + $0xe4] sm:$0xff]
  %v62 = vld [vmem:[%s1 + $0xec] sm:$0xf]
  %v63 = vld [vmem:[%s1 + $0xf0] sm:$0xff]
  %v64 = vld [vmem:[%s1 + $0xf8] sm:$0xf]
  %v65 = vld [vmem:[%s1 + $0xfc] sm:$0xff]
  %v66 = vld [vmem:[%s1 + $0x104] sm:$0xf]
  %v67 = vld [vmem:[%s1 + $0x108] sm:$0xff]
  %v68 = vld [vmem:[%s1 + $0x110] sm:$0xf]
  %v69 = vld [vmem:[%s1 + $0x114] sm:$0xff]
  %v70 = vld [vmem:[%s1 + $0x11c] sm:$0xf]
  %v71 = vld [vmem:[%s1 + $0x120] sm:$0xff]
  %v72 = vld [vmem:[%s1 + $0x128] sm:$0xf]
  %v73 = vld [vmem:[%s1 + $0x12c] sm:$0xff]
  %v74 = vld [vmem:[%s1 + $0x134] sm:$0xf]
  %v75 = vld [vmem:[%s1 + $0x138] sm:$0xff]
  %v76 = vld [vmem:[%s1 + $0x140] sm:$0xf]
  %v77 = vld [vmem:[%s1 + $0x144] sm:$0xff]
  %v78 = vld [vmem:[%s1 + $0x14c] sm:$0xf]
  %v79 = vld [vmem:[%s1 + $0x150] sm:$0xff]
  %v80 = vld [vmem:[%s1 + $0x158] sm:$0xf]
  %v81 = vld [vmem:[%s1 + $0x15c] sm:$0xff]
  %v82 = vld [vmem:[%s1 + $0x164] sm:$0xf]
  %v83 = vld [vmem:[%s1 + $0x168] sm:$0xff]
  %v84 = vld [vmem:[%s1 + $0x170] sm:$0xf]
  %v85 = vld [vmem:[%s1 + $0x174] sm:$0xff]
  %v86 = vld [vmem:[%s1 + $0x17c] sm:$0xf]
  %v95 = vunpack.c.l.b16 %v15
  %v96 = vunpack.c.h.b16 %v15
  %v97 = vunpack.c.l.b16 %v16
  %v98 = vunpack.c.h.b16 %v16
  %v99 = vunpack.c.l.b16 %v17
  %v100 = vunpack.c.h.b16 %v17
  %v101 = vunpack.c.l.b16 %v18
  %v102 = vunpack.c.h.b16 %v18
  %v103 = vunpack.c.l.b16 %v19
  %v104 = vunpack.c.h.b16 %v19
  %v105 = vunpack.c.l.b16 %v20
  %v106 = vunpack.c.h.b16 %v20
  %v107 = vunpack.c.l.b16 %v21
  %v108 = vunpack.c.h.b16 %v21
  %v109 = vunpack.c.l.b16 %v22
  %v110 = vunpack.c.h.b16 %v22
  %v111 = vpack.c.b16 %v97, %v95
  %v112 = vpack.c.b16 %v98, %v96
  %v113 = vpack.c.b16 %v101, %v99
  %v114 = vpack.c.b16 %v102, %v100
  %v115 = vpack.c.b16 %v105, %v103
  %v116 = vpack.c.b16 %v106, %v104
  %v117 = vpack.c.b16 %v109, %v107
  %v118 = vpack.c.b16 %v110, %v108
  %v191 = vunpack.c.l.b16 %v23
  %v192 = vunpack.c.h.b16 %v23
  %v193 = vunpack.c.l.b16 %v24
  %v194 = vunpack.c.l.b16 %v25
  %v195 = vunpack.c.h.b16 %v25
  %v196 = vunpack.c.l.b16 %v26
  %v197 = vunpack.c.l.b16 %v27
  %v198 = vunpack.c.h.b16 %v27
  %v199 = vunpack.c.l.b16 %v28
  %v200 = vunpack.c.l.b16 %v29
  %v201 = vunpack.c.h.b16 %v29
  %v202 = vunpack.c.l.b16 %v30
  %v203 = vunpack.c.l.b16 %v31
  %v204 = vunpack.c.h.b16 %v31
  %v205 = vunpack.c.l.b16 %v32
  %v206 = vunpack.c.l.b16 %v33
  %v207 = vunpack.c.h.b16 %v33
  %v208 = vunpack.c.l.b16 %v34
  %v209 = vunpack.c.l.b16 %v35
  %v210 = vunpack.c.h.b16 %v35
  %v211 = vunpack.c.l.b16 %v36
  %v212 = vunpack.c.l.b16 %v37
  %v213 = vunpack.c.h.b16 %v37
  %v214 = vunpack.c.l.b16 %v38
  %v215 = vunpack.c.l.b16 %v39
  %v216 = vunpack.c.h.b16 %v39
  %v217 = vunpack.c.l.b16 %v40
  %v218 = vunpack.c.l.b16 %v41
  %v219 = vunpack.c.h.b16 %v41
  %v220 = vunpack.c.l.b16 %v42
  %v221 = vunpack.c.l.b16 %v43
  %v222 = vunpack.c.h.b16 %v43
  %v223 = vunpack.c.l.b16 %v44
  %v224 = vunpack.c.l.b16 %v45
  %v225 = vunpack.c.h.b16 %v45
  %v226 = vunpack.c.l.b16 %v46
  %v227 = vunpack.c.l.b16 %v47
  %v228 = vunpack.c.h.b16 %v47
  %v229 = vunpack.c.l.b16 %v48
  %v230 = vunpack.c.l.b16 %v49
  %v231 = vunpack.c.h.b16 %v49
  %v232 = vunpack.c.l.b16 %v50
  %v233 = vunpack.c.l.b16 %v51
  %v234 = vunpack.c.h.b16 %v51
  %v235 = vunpack.c.l.b16 %v52
  %v236 = vunpack.c.l.b16 %v53
  %v237 = vunpack.c.h.b16 %v53
  %v238 = vunpack.c.l.b16 %v54
  %v239 = vunpack.c.l.b16 %v55
  %v240 = vunpack.c.h.b16 %v55
  %v241 = vunpack.c.l.b16 %v56
  %v242 = vunpack.c.l.b16 %v57
  %v243 = vunpack.c.h.b16 %v57
  %v244 = vunpack.c.l.b16 %v58
  %v245 = vunpack.c.l.b16 %v59
  %v246 = vunpack.c.h.b16 %v59
  %v247 = vunpack.c.l.b16 %v60
  %v248 = vunpack.c.l.b16 %v61
  %v249 = vunpack.c.h.b16 %v61
  %v250 = vunpack.c.l.b16 %v62
  %v251 = vunpack.c.l.b16 %v63
  %v252 = vunpack.c.h.b16 %v63
  %v253 = vunpack.c.l.b16 %v64
  %v254 = vunpack.c.l.b16 %v65
  %v255 = vunpack.c.h.b16 %v65
  %v256 = vunpack.c.l.b16 %v66
  %v257 = vunpack.c.l.b16 %v67
  %v258 = vunpack.c.h.b16 %v67
  %v259 = vunpack.c.l.b16 %v68
  %v260 = vunpack.c.l.b16 %v69
  %v261 = vunpack.c.h.b16 %v69
  %v262 = vunpack.c.l.b16 %v70
  %v263 = vunpack.c.l.b16 %v71
  %v264 = vunpack.c.h.b16 %v71
  %v265 = vunpack.c.l.b16 %v72
  %v266 = vunpack.c.l.b16 %v73
  %v267 = vunpack.c.h.b16 %v73
  %v268 = vunpack.c.l.b16 %v74
  %v269 = vunpack.c.l.b16 %v75
  %v270 = vunpack.c.h.b16 %v75
  %v271 = vunpack.c.l.b16 %v76
  %v272 = vunpack.c.l.b16 %v77
  %v273 = vunpack.c.h.b16 %v77
  %v274 = vunpack.c.l.b16 %v78
  %v275 = vunpack.c.l.b16 %v79
  %v276 = vunpack.c.h.b16 %v79
  %v277 = vunpack.c.l.b16 %v80
  %v278 = vunpack.c.l.b16 %v81
  %v279 = vunpack.c.h.b16 %v81
  %v280 = vunpack.c.l.b16 %v82
  %v281 = vunpack.c.l.b16 %v83
  %v282 = vunpack.c.h.b16 %v83
  %v283 = vunpack.c.l.b16 %v84
  %v284 = vunpack.c.l.b16 %v85
  %v285 = vunpack.c.h.b16 %v85
  %v286 = vunpack.c.l.b16 %v86
  %v287 = vpack.c.b16 %v194, %v191
  %v288 = vpack.c.b16 %v195, %v192
  %v289 = vpack.c.b16 %v196, %v193
  %v290 = vpack.c.b16 %v200, %v197
  %v291 = vpack.c.b16 %v201, %v198
  %v292 = vpack.c.b16 %v202, %v199
  %v293 = vpack.c.b16 %v206, %v203
  %v294 = vpack.c.b16 %v207, %v204
  %v295 = vpack.c.b16 %v208, %v205
  %v296 = vpack.c.b16 %v212, %v209
  %v297 = vpack.c.b16 %v213, %v210
  %v298 = vpack.c.b16 %v214, %v211
  %v299 = vpack.c.b16 %v218, %v215
  %v300 = vpack.c.b16 %v219, %v216
  %v301 = vpack.c.b16 %v220, %v217
  %v302 = vpack.c.b16 %v224, %v221
  %v303 = vpack.c.b16 %v225, %v222
  %v304 = vpack.c.b16 %v226, %v223
  %v305 = vpack.c.b16 %v230, %v227
  %v306 = vpack.c.b16 %v231, %v228
  %v307 = vpack.c.b16 %v232, %v229
  %v308 = vpack.c.b16 %v236, %v233
  %v309 = vpack.c.b16 %v237, %v234
  %v310 = vpack.c.b16 %v238, %v235
  %v311 = vpack.c.b16 %v242, %v239
  %v312 = vpack.c.b16 %v243, %v240
  %v313 = vpack.c.b16 %v244, %v241
  %v314 = vpack.c.b16 %v248, %v245
  %v315 = vpack.c.b16 %v249, %v246
  %v316 = vpack.c.b16 %v250, %v247
  %v317 = vpack.c.b16 %v254, %v251
  %v318 = vpack.c.b16 %v255, %v252
  %v319 = vpack.c.b16 %v256, %v253
  %v320 = vpack.c.b16 %v260, %v257
  %v321 = vpack.c.b16 %v261, %v258
  %v322 = vpack.c.b16 %v262, %v259
  %v323 = vpack.c.b16 %v266, %v263
  %v324 = vpack.c.b16 %v267, %v264
  %v325 = vpack.c.b16 %v268, %v265
  %v326 = vpack.c.b16 %v272, %v269
  %v327 = vpack.c.b16 %v273, %v270
  %v328 = vpack.c.b16 %v274, %v271
  %v329 = vpack.c.b16 %v278, %v275
  %v330 = vpack.c.b16 %v279, %v276
  %v331 = vpack.c.b16 %v280, %v277
  %v332 = vpack.c.b16 %v284, %v281
  %v333 = vpack.c.b16 %v285, %v282
  %v334 = vpack.c.b16 %v286, %v283
  %383 = vmatprep.subr.bf16.mxu0 %v288
  %384 = vmatpush1.bf16.msra.mxu0 %v287
  %385 = vmatprep.subr.bf16.mxu0 %v291
  %386 = vmatpush1.bf16.msra.mxu0 %v290
  %387 = vmatprep.subr.bf16.mxu0 %v294
  %388 = vmatpush1.bf16.msra.mxu0 %v293
  %389 = vmatprep.subr.bf16.mxu0 %v297
  %390 = vmatpush1.bf16.msra.mxu0 %v296
  %391 = vmatprep.subr.bf16.mxu0 %v300
  %392 = vmatpush1.bf16.msra.mxu0 %v299
  %393 = vmatprep.subr.bf16.mxu0 %v303
  %394 = vmatpush1.bf16.msra.mxu0 %v302
  %395 = vmatprep.subr.bf16.mxu0 %v306
  %396 = vmatpush1.bf16.msra.mxu0 %v305
  %397 = vmatprep.subr.bf16.mxu0 %v309
  %398 = vmatpush1.bf16.msra.mxu0 %v308
  %399 = vmatprep.subr.bf16.mxu0 %v312
  %400 = vmatpush1.bf16.msra.mxu0 %v311
  %401 = vmatprep.subr.bf16.mxu0 %v315
  %402 = vmatpush1.bf16.msra.mxu0 %v314
  %403 = vmatprep.subr.bf16.mxu0 %v318
  %404 = vmatpush1.bf16.msra.mxu0 %v317
  %405 = vmatprep.subr.bf16.mxu0 %v321
  %406 = vmatpush1.bf16.msra.mxu0 %v320
  %407 = vmatprep.subr.bf16.mxu0 %v324
  %408 = vmatpush1.bf16.msra.mxu0 %v323
  %409 = vmatprep.subr.bf16.mxu0 %v327
  %410 = vmatpush1.bf16.msra.mxu0 %v326
  %411 = vmatprep.subr.bf16.mxu0 %v330
  %412 = vmatpush1.bf16.msra.mxu0 %v329
  %413 = vmatprep.subr.bf16.mxu0 %v333
  %414 = vmatpush1.bf16.msra.mxu0 %v332
  %415 = vmatprep.mubr.bf16.mxu0 %v112
  %416 = vmatmul.mubr.bf16.gmra.mrb[0].mxu0 %v111
  %v417 = vpop.f32.mrb[0].mxu0
  %v418 = vadd.f32 0.0, %v417
  %v419 = vpop.f32.mrb[0].mxu0
  %v420 = vadd.f32 0.0, %v419
  %v421 = vpop.f32.mrb[0].mxu0
  %v422 = vadd.f32 0.0, %v421
  %v423 = vpop.f32.mrb[0].mxu0
  %v424 = vadd.f32 0.0, %v423
  %425 = vmatprep.mubr.bf16.mxu0 %v114
  %426 = vmatmul.mubr.bf16.gmra.mrb[0].mxu0 %v113
  %v427 = vpop.f32.mrb[0].mxu0
  %v428 = vadd.f32 0.0, %v427
  %v429 = vpop.f32.mrb[0].mxu0
  %v430 = vadd.f32 0.0, %v429
  %v431 = vpop.f32.mrb[0].mxu0
  %v432 = vadd.f32 0.0, %v431
  %v433 = vpop.f32.mrb[0].mxu0
  %v434 = vadd.f32 0.0, %v433
  %435 = vmatprep.mubr.bf16.mxu0 %v116
  %436 = vmatmul.mubr.bf16.gmra.mrb[0].mxu0 %v115
  %v437 = vpop.f32.mrb[0].mxu0
  %v438 = vadd.f32 0.0, %v437
  %v439 = vpop.f32.mrb[0].mxu0
  %v440 = vadd.f32 0.0, %v439
  %v441 = vpop.f32.mrb[0].mxu0
  %v442 = vadd.f32 0.0, %v441
  %v443 = vpop.f32.mrb[0].mxu0
  %v444 = vadd.f32 0.0, %v443
  %445 = vmatprep.mubr.bf16.mxu0 %v118
  %446 = vmatmul.mubr.bf16.gmra.mrb[0].mxu0 %v117
  %v447 = vpop.f32.mrb[0].mxu0
  %v448 = vadd.f32 0.0, %v447
  %v449 = vpop.f32.mrb[0].mxu0
  %v450 = vadd.f32 0.0, %v449
  %v451 = vpop.f32.mrb[0].mxu0
  %v452 = vadd.f32 0.0, %v451
  %v453 = vpop.f32.mrb[0].mxu0
  %v454 = vadd.f32 0.0, %v453
  %455 = vdwg.mxu0
  %456 = vmatprep.subr.bf16.mxu0 0
  %457 = vmatpush1.bf16.msra.mxu0 %v289
  %458 = vmatprep.subr.bf16.mxu0 0
  %459 = vmatpush1.bf16.msra.mxu0 %v292
  %460 = vmatprep.subr.bf16.mxu0 0
  %461 = vmatpush1.bf16.msra.mxu0 %v295
  %462 = vmatprep.subr.bf16.mxu0 0
  %463 = vmatpush1.bf16.msra.mxu0 %v298
  %464 = vmatprep.subr.bf16.mxu0 0
  %465 = vmatpush1.bf16.msra.mxu0 %v301
  %466 = vmatprep.subr.bf16.mxu0 0
  %467 = vmatpush1.bf16.msra.mxu0 %v304
  %468 = vmatprep.subr.bf16.mxu0 0
  %469 = vmatpush1.bf16.msra.mxu0 %v307
  %470 = vmatprep.subr.bf16.mxu0 0
  %471 = vmatpush1.bf16.msra.mxu0 %v310
  %472 = vmatprep.subr.bf16.mxu0 0
  %473 = vmatpush1.bf16.msra.mxu0 %v313
  %474 = vmatprep.subr.bf16.mxu0 0
  %475 = vmatpush1.bf16.msra.mxu0 %v316
  %476 = vmatprep.subr.bf16.mxu0 0
  %477 = vmatpush1.bf16.msra.mxu0 %v319
  %478 = vmatprep.subr.bf16.mxu0 0
  %479 = vmatpush1.bf16.msra.mxu0 %v322
  %480 = vmatprep.subr.bf16.mxu0 0
  %481 = vmatpush1.bf16.msra.mxu0 %v325
  %482 = vmatprep.subr.bf16.mxu0 0
  %483 = vmatpush1.bf16.msra.mxu0 %v328
  %484 = vmatprep.subr.bf16.mxu0 0
  %485 = vmatpush1.bf16.msra.mxu0 %v331
  %486 = vmatprep.subr.bf16.mxu0 0
  %487 = vmatpush1.bf16.msra.mxu0 %v334
  %488 = vmatprep.mubr.bf16.mxu0 %v112
  %489 = vmatmul.mubr.bf16.gmra.mrb[0].mxu0 %v111
  %v490 = vpop.f32.mrb[0].mxu0
  %v491 = vadd.f32 0.0, %v490
  %v492 = vpop.f32.mrb[0].mxu0
  %v493 = vpop.f32.mrb[0].mxu0
  %v494 = vadd.f32 0.0, %v493
  %v495 = vpop.f32.mrb[0].mxu0
  %496 = vmatprep.mubr.bf16.mxu0 %v114
  %497 = vmatmul.mubr.bf16.gmra.mrb[0].mxu0 %v113
  %v498 = vpop.f32.mrb[0].mxu0
  %v499 = vadd.f32 0.0, %v498
  %v500 = vpop.f32.mrb[0].mxu0
  %v501 = vpop.f32.mrb[0].mxu0
  %v502 = vadd.f32 0.0, %v501
  %v503 = vpop.f32.mrb[0].mxu0
  %504 = vmatprep.mubr.bf16.mxu0 %v116
  %505 = vmatmul.mubr.bf16.gmra.mrb[0].mxu0 %v115
  %v506 = vpop.f32.mrb[0].mxu0
  %v507 = vadd.f32 0.0, %v506
  %v508 = vpop.f32.mrb[0].mxu0
  %v509 = vpop.f32.mrb[0].mxu0
  %v510 = vadd.f32 0.0, %v509
  %v511 = vpop.f32.mrb[0].mxu0
  %512 = vmatprep.mubr.bf16.mxu0 %v118
  %513 = vmatmul.mubr.bf16.gmra.mrb[0].mxu0 %v117
  %v514 = vpop.f32.mrb[0].mxu0
  %v515 = vadd.f32 0.0, %v514
  %v516 = vpop.f32.mrb[0].mxu0
  %v517 = vpop.f32.mrb[0].mxu0
  %v518 = vadd.f32 0.0, %v517
  %v519 = vpop.f32.mrb[0].mxu0
  %520 = vdwg.mxu0
  %v529 = vrot.slane %v420, 1
  %v530 = vrot.slane %v424, 1
  %v531 = vrot.slane %v430, 1
  %v532 = vrot.slane %v434, 1
  %v533 = vrot.slane %v440, 1
  %v534 = vrot.slane %v444, 1
  %v535 = vrot.slane %v450, 1
  %v536 = vrot.slane %v454, 1
  %v545 = vadd.f32 %v418, %v529
  %v546 = vadd.f32 %v422, %v530
  %v547 = vadd.f32 %v428, %v531
  %v548 = vadd.f32 %v432, %v532
  %v549 = vadd.f32 %v438, %v533
  %v550 = vadd.f32 %v442, %v534
  %v551 = vadd.f32 %v448, %v535
  %v552 = vadd.f32 %v452, %v536
  %v561 = vrot.slane %v491, 2
  %v562 = vrot.slane %v494, 2
  %v563 = vrot.slane %v499, 2
  %v564 = vrot.slane %v502, 2
  %v565 = vrot.slane %v507, 2
  %v566 = vrot.slane %v510, 2
  %v567 = vrot.slane %v515, 2
  %v568 = vrot.slane %v518, 2
  %v577 = vadd.f32 %v545, %v561
  %v578 = vadd.f32 %v546, %v562
  %v579 = vadd.f32 %v547, %v563
  %v580 = vadd.f32 %v548, %v564
  %v581 = vadd.f32 %v549, %v565
  %v582 = vadd.f32 %v550, %v566
  %v583 = vadd.f32 %v551, %v567
  %v584 = vadd.f32 %v552, %v568
  %vm585 = vcmask 1045504
  %v586 = vsel %vm585, %v577, -inf
  %v587 = vrot.slane %v586, 4
  %v588 = vmax.f32 %v586, %v587
  %v589 = vrot.slane %v588, 2
  %v590 = vmax.f32 %v588, %v589
  %v591 = vrot.slane %v590, 1
  %v592 = vmax.f32 %v590, %v591
  %v593 = vsel %vm585, %v578, -inf
  %v594 = vrot.slane %v593, 4
  %v595 = vmax.f32 %v593, %v594
  %v596 = vrot.slane %v595, 2
  %v597 = vmax.f32 %v595, %v596
  %v598 = vrot.slane %v597, 1
  %v599 = vmax.f32 %v597, %v598
  %v600 = vsel %vm585, %v579, -inf
  %v601 = vrot.slane %v600, 4
  %v602 = vmax.f32 %v600, %v601
  %v603 = vrot.slane %v602, 2
  %v604 = vmax.f32 %v602, %v603
  %v605 = vrot.slane %v604, 1
  %v606 = vmax.f32 %v604, %v605
  %v607 = vsel %vm585, %v580, -inf
  %v608 = vrot.slane %v607, 4
  %v609 = vmax.f32 %v607, %v608
  %v610 = vrot.slane %v609, 2
  %v611 = vmax.f32 %v609, %v610
  %v612 = vrot.slane %v611, 1
  %v613 = vmax.f32 %v611, %v612
  %v614 = vsel %vm585, %v581, -inf
  %v615 = vrot.slane %v614, 4
  %v616 = vmax.f32 %v614, %v615
  %v617 = vrot.slane %v616, 2
  %v618 = vmax.f32 %v616, %v617
  %v619 = vrot.slane %v618, 1
  %v620 = vmax.f32 %v618, %v619
  %v621 = vsel %vm585, %v582, -inf
  %v622 = vrot.slane %v621, 4
  %v623 = vmax.f32 %v621, %v622
  %v624 = vrot.slane %v623, 2
  %v625 = vmax.f32 %v623, %v624
  %v626 = vrot.slane %v625, 1
  %v627 = vmax.f32 %v625, %v626
  %v628 = vsel %vm585, %v583, -inf
  %v629 = vrot.slane %v628, 4
  %v630 = vmax.f32 %v628, %v629
  %v631 = vrot.slane %v630, 2
  %v632 = vmax.f32 %v630, %v631
  %v633 = vrot.slane %v632, 1
  %v634 = vmax.f32 %v632, %v633
  %v635 = vsel %vm585, %v584, -inf
  %v636 = vrot.slane %v635, 4
  %v637 = vmax.f32 %v635, %v636
  %v638 = vrot.slane %v637, 2
  %v639 = vmax.f32 %v637, %v638
  %v640 = vrot.slane %v639, 1
  %v641 = vmax.f32 %v639, %v640
  %v642 = vld [vmem:[%s2] sm:$0x1]
  %v644 = vlaneseq
  %v645 = vshrl.u32 %v644, 7
  %v646 = vsub.s32 0, %v645
  %v647 = vrot.slane %v642, %v646
  %v649 = vadd.f32 %v592, %v647
  %v650 = vadd.f32 %v599, %v647
  %v651 = vadd.f32 %v606, %v647
  %v652 = vadd.f32 %v613, %v647
  %v653 = vadd.f32 %v620, %v647
  %v654 = vadd.f32 %v627, %v647
  %v655 = vadd.f32 %v634, %v647
  %v656 = vadd.f32 %v641, %v647
  %v657 = vmax.f32 %v649, 0.0
  %v658 = vmax.f32 %v650, 0.0
  %v659 = vmax.f32 %v651, 0.0
  %v660 = vmax.f32 %v652, 0.0
  %v661 = vmax.f32 %v653, 0.0
  %v662 = vmax.f32 %v654, 0.0
  %v663 = vmax.f32 %v655, 0.0
  %v664 = vmax.f32 %v656, 0.0
  %v673 = vrot.slane %v658, 7
  %vm674 = vcmask 1041409
  %v675 = vsel %vm674, %v673, %v657
  %v676 = vrot.slane %v659, 6
  %vm677 = vcmask 1042434
  %v678 = vsel %vm677, %v676, %v675
  %v679 = vrot.slane %v660, 5
  %vm680 = vcmask 1043459
  %v681 = vsel %vm680, %v679, %v678
  %v682 = vrot.slane %v661, 4
  %vm683 = vcmask 1044484
  %v684 = vsel %vm683, %v682, %v681
  %v685 = vrot.slane %v662, 3
  %vm686 = vcmask 1045509
  %v687 = vsel %vm686, %v685, %v684
  %v688 = vrot.slane %v663, 2
  %vm689 = vcmask 1046534
  %v690 = vsel %vm689, %v688, %v687
  %v691 = vrot.slane %v664, 1
  %vm692 = vcmask 1047559
  %v693 = vsel %vm692, %v691, %v690
  %695 = vst [vmem:[%s3] sm:$0xff] %v693
  // Predicated region
  $region14: #{forward.1} parent=0 // pred_check
    _
  $region15: #{forward.1} parent=0 // pred_check_branch
    %697 = sbr.rel (0) target = $region17
  $region16: #{forward.1} parent=0 // pred_region
    _
  $region17: #{forward.1} parent=0 // pred_fallthru
    _
  // Predicated region
  $region18: #{forward.1} parent=0 // pred_check
    _
  $region19: #{forward.1} parent=0 // pred_check_branch
    %699 = sbr.rel (0) target = $region21
  $region20: #{forward.1} parent=0 // pred_region
    _
  $region21: #{forward.1} parent=0 // pred_fallthru
    _

</llo_original>
